<compile_context>
chip_gen: v6e
topology: v6e:2x2x1
jax: 0.10.0
libtpu: 0.0.40
codegen_flags: <defaults>
</compile_context>

<pallas_src>
import jax
import jax.numpy as jnp
from jax import lax
from jax.experimental import pallas as pl
from jax.experimental.pallas import tpu as pltpu


def three_layer_kernel(x_ref, w1_ref, w2_ref, w3_ref, ot_ref):
    # In-kernel bf16 cast of the activation tile (free on idle VPU slots).
    xb = x_ref[...].astype(jnp.bfloat16)

    # linear1 (bias=False) + ReLU   (dropout1 == identity at inference)
    # w1_ref is pre-transposed to [D_in, D_h1] -> native (M,K)x(K,N) matmul.
    h1 = jnp.dot(xb, w1_ref[...], preferred_element_type=jnp.float32)
    h1 = jnp.maximum(h1, 0.0).astype(jnp.bfloat16)

    # linear2 (bias=False) + ReLU   (dropout2 == identity at inference)
    h2 = jnp.dot(h1, w2_ref[...], preferred_element_type=jnp.float32)
    h2 = jnp.maximum(h2, 0.0).astype(jnp.bfloat16)

    # linear3 (bias=False), computed transposed:
    #   out^T[D_out, tile_b] = w3[D_out, D_h2] @ h2^T[D_h2, tile_b]
    # so the output store is lane-dense (last dim = tile_b >= 128).
    ot = lax.dot_general(w3_ref[...], h2,
                         dimension_numbers=(((1,), (1,)), ((), ())),
                         preferred_element_type=jnp.float32)
    ot_ref[...] = ot.astype(ot_ref.dtype)


def three_layer_net(x, w1, w2, w3, *, tile_b=512):
    """x: [B, D_in] f32; w1: [D_h1, D_in]; w2: [D_h2, D_h1]; w3: [D_out, D_h2]
    (PyTorch nn.Linear weight convention, bias=False). Returns [B, D_out] f32."""
    B, D_in = x.shape
    D_h1 = w1.shape[0]
    D_h2 = w2.shape[0]
    D_out = w3.shape[0]

    # One-time weight prep (hoist to model-load time if called repeatedly):
    # bf16 for the MXU; layers 1/2 transposed to [in, out].
    w1t = w1.T.astype(jnp.bfloat16)              # [D_in, D_h1]
    w2t = w2.T.astype(jnp.bfloat16)              # [D_h1, D_h2]
    w3b = w3.astype(jnp.bfloat16)                # [D_out, D_h2] (used as LHS)

    # tile_b must be a multiple of 128 (it is the lane dim of the transposed
    # output block). For small batches shrink it so the grid still has >= 2
    # steps when possible (v7x megacore); never collapse below 128.
    tile_b = max(128, (tile_b // 128) * 128)
    if B <= tile_b:
        if B > 128:
            tile_b = pl.cdiv(B, 2 * 128) * 128   # ~half the batch -> 2 steps
        else:
            tile_b = 128                          # tiny batch: single step
    padded_B = pl.cdiv(B, tile_b) * tile_b

    xp = x if padded_B == B else jnp.pad(x, ((0, padded_B - B), (0, 0)))

    out_t = pl.pallas_call(
        three_layer_kernel,
        out_shape=jax.ShapeDtypeStruct((D_out, padded_B), jnp.float32),
        grid=(padded_B // tile_b,),
        in_specs=[
            pl.BlockSpec((tile_b, D_in), lambda i: (i, 0)),
            # Weights: full-array blocks, constant index -> VMEM-resident.
            pl.BlockSpec((D_in, D_h1), lambda i: (0, 0)),
            pl.BlockSpec((D_h1, D_h2), lambda i: (0, 0)),
            pl.BlockSpec((D_out, D_h2), lambda i: (0, 0)),
        ],
        # Lane-dense output: last dim of the block is tile_b (>= 128).
        out_specs=pl.BlockSpec((D_out, tile_b), lambda i: (0, i)),
        compiler_params=pltpu.CompilerParams(
            dimension_semantics=("parallel",)),
    )(xp, w1t, w2t, w3b)

    # Transpose back to the PyTorch [B, D_out] convention (trivial, done by XLA).
    return out_t[:, :B].T


def _init_linear_weight(key, out_features, in_features):
    # Deterministic init mimicking PyTorch's default:
    # U(-1/sqrt(fan_in), 1/sqrt(fan_in)), shape [out, in].
    bound = 1.0 / jnp.sqrt(jnp.float32(in_features))
    return jax.random.uniform(key, (out_features, in_features),
                              dtype=jnp.float32, minval=-bound, maxval=bound)


def _reference(x, w1, w2, w3):
    # Pure-JAX f32 reference (eval-mode dropout == identity).
    h = jnp.maximum(x @ w1.T, 0.0)
    h = jnp.maximum(h @ w2.T, 0.0)
    return h @ w3.T


if __name__ == "__main__":
    # Shapes consistent with the module: D_in=32, D_h1=64, D_h2=64, D_out=16.
    B, D_in, D_h1, D_h2, D_out = 256, 32, 64, 64, 16

    key = jax.random.PRNGKey(0)
    kx, k1, k2, k3 = jax.random.split(key, 4)

    x = jax.random.normal(kx, (B, D_in), dtype=jnp.float32)
    w1 = _init_linear_weight(k1, D_h1, D_in)
    w2 = _init_linear_weight(k2, D_h2, D_h1)
    w3 = _init_linear_weight(k3, D_out, D_h2)

    # Main run: B=256 -> tile_b=128, a 2-step "parallel" grid, no padding.
    out = jax.block_until_ready(three_layer_net(x, w1, w2, w3))
    ref = _reference(x, w1, w2, w3)
    assert out.shape == (B, D_out)
    # bf16 matmuls with f32 accumulation -> loose tolerance vs. f32 reference.
    assert jnp.allclose(out, ref, atol=5e-2, rtol=5e-2), (
        float(jnp.max(jnp.abs(out - ref))))

    # Secondary run exercising the batch-padding path (B not a tile multiple).
    B2 = 200
    x2 = x[:B2]
    out2 = jax.block_until_ready(three_layer_net(x2, w1, w2, w3))
    ref2 = _reference(x2, w1, w2, w3)
    assert out2.shape == (B2, D_out)
    assert jnp.allclose(out2, ref2, atol=5e-2, rtol=5e-2), (
        float(jnp.max(jnp.abs(out2 - ref2))))

    print("KERNEL_OK")
</pallas_src>

<mosaic_0001>
module attributes {stable_mosaic.version = 11 : i64} {
  func.func @three_layer_kernel(%arg0: i32, %arg1: memref<128x32xf32, #tpu.memory_space<vmem>>, %arg2: memref<32x64xbf16, #tpu.memory_space<vmem>>, %arg3: memref<64x64xbf16, #tpu.memory_space<vmem>>, %arg4: memref<16x64xbf16, #tpu.memory_space<vmem>>, %arg5: memref<16x128xf32, #tpu.memory_space<vmem>>) attributes {dimension_semantics = [#tpu.dimension_semantics<parallel>], iteration_bounds = array<i64: 2>, scalar_prefetch = 0 : i64, scratch_operands = 0 : i64, tpu.core_type = #tpu.core_type<tc>, window_params = [{transform_indices = @transform_0, window_bounds = array<i64: 128, 32>}, {pipeline_mode = #tpu.pipeline_mode<synchronous>, transform_indices = @transform_1, window_bounds = array<i64: 32, 64>}, {pipeline_mode = #tpu.pipeline_mode<synchronous>, transform_indices = @transform_2, window_bounds = array<i64: 64, 64>}, {pipeline_mode = #tpu.pipeline_mode<synchronous>, transform_indices = @transform_3, window_bounds = array<i64: 16, 64>}, {transform_indices = @transform_4, window_bounds = array<i64: 16, 128>}]} {
    %c0 = arith.constant 0 : index
    %c0_0 = arith.constant 0 : index
    %0 = vector.load %arg1[%c0, %c0_0] : memref<128x32xf32, #tpu.memory_space<vmem>>, vector<128x32xf32>
    %1 = arith.truncf %0 : vector<128x32xf32> to vector<128x32xbf16>
    %c0_1 = arith.constant 0 : index
    %c0_2 = arith.constant 0 : index
    %2 = vector.load %arg2[%c0_1, %c0_2] : memref<32x64xbf16, #tpu.memory_space<vmem>>, vector<32x64xbf16>
    %cst = arith.constant dense<0.000000e+00> : vector<128x64xf32>
    %3 = tpu.matmul %1, %2, %cst {dimension_numbers = #tpu.dot_dimension_numbers<[1], [0], [0], [1], [0, 0, 1, 1], [], []>} : vector<128x32xbf16>, vector<32x64xbf16>, vector<128x64xf32> -> vector<128x64xf32>
    %cst_3 = arith.constant 0.000000e+00 : f32
    %4 = vector.broadcast %cst_3 : f32 to vector<128x64xf32>
    %5 = arith.maximumf %3, %4 : vector<128x64xf32>
    %6 = arith.truncf %5 : vector<128x64xf32> to vector<128x64xbf16>
    %c0_4 = arith.constant 0 : index
    %c0_5 = arith.constant 0 : index
    %7 = vector.load %arg3[%c0_4, %c0_5] : memref<64x64xbf16, #tpu.memory_space<vmem>>, vector<64x64xbf16>
    %cst_6 = arith.constant dense<0.000000e+00> : vector<128x64xf32>
    %8 = tpu.matmul %6, %7, %cst_6 {dimension_numbers = #tpu.dot_dimension_numbers<[1], [0], [0], [1], [0, 0, 1, 1], [], []>} : vector<128x64xbf16>, vector<64x64xbf16>, vector<128x64xf32> -> vector<128x64xf32>
    %cst_7 = arith.constant 0.000000e+00 : f32
    %9 = vector.broadcast %cst_7 : f32 to vector<128x64xf32>
    %10 = arith.maximumf %8, %9 : vector<128x64xf32>
    %11 = arith.truncf %10 : vector<128x64xf32> to vector<128x64xbf16>
    %c0_8 = arith.constant 0 : index
    %c0_9 = arith.constant 0 : index
    %12 = vector.load %arg4[%c0_8, %c0_9] : memref<16x64xbf16, #tpu.memory_space<vmem>>, vector<16x64xbf16>
    %cst_10 = arith.constant dense<0.000000e+00> : vector<16x128xf32>
    %13 = tpu.matmul %12, %11, %cst_10 {dimension_numbers = #tpu.dot_dimension_numbers<[1], [1], [0], [0], [0, 0, 1, 0], [], []>} : vector<16x64xbf16>, vector<128x64xbf16>, vector<16x128xf32> -> vector<16x128xf32>
    %c0_11 = arith.constant 0 : index
    %c0_12 = arith.constant 0 : index
    %14 = vector.load %arg5[%c0_11, %c0_12] : memref<16x128xf32, #tpu.memory_space<vmem>>, vector<16x128xf32>
    tpu.vector_store %arg5[%c0_11, %c0_12], %13 {strides = array<i32>} : memref<16x128xf32, #tpu.memory_space<vmem>>, vector<16x128xf32>,
    return
  }
  func.func @transform_0(%arg0: i32) -> (i32, i32) {
    %c0_i32 = arith.constant 0 : i32
    %c0_i32_0 = arith.constant 0 : i32
    return %arg0, %c0_i32 : i32, i32
  }
  func.func @transform_1(%arg0: i32) -> (i32, i32) {
    %c0_i32 = arith.constant 0 : i32
    %c0_i32_0 = arith.constant 0 : i32
    %c0_i32_1 = arith.constant 0 : i32
    return %c0_i32, %c0_i32_0 : i32, i32
  }
  func.func @transform_2(%arg0: i32) -> (i32, i32) {
    %c0_i32 = arith.constant 0 : i32
    %c0_i32_0 = arith.constant 0 : i32
    %c0_i32_1 = arith.constant 0 : i32
    return %c0_i32, %c0_i32_0 : i32, i32
  }
  func.func @transform_3(%arg0: i32) -> (i32, i32) {
    %c0_i32 = arith.constant 0 : i32
    %c0_i32_0 = arith.constant 0 : i32
    %c0_i32_1 = arith.constant 0 : i32
    return %c0_i32, %c0_i32_0 : i32, i32
  }
  func.func @transform_4(%arg0: i32) -> (i32, i32) {
    %c0_i32 = arith.constant 0 : i32
    %c0_i32_0 = arith.constant 0 : i32
    return %c0_i32, %arg0 : i32, i32
  }
}

</mosaic_0001>

<llo_original>
// kernel: tpu_custom_call.1
$region0: #{tpu_custom_call.1}
  #allocation0 [shape = 'u32[]', space=smem, size = 0x4, offset = 0x4, fixed_abs, tag = 'smem constant byte address 0x4 - core index']
  #allocation1 [shape = 'u32[144,128]{1,0:T(1,128)}', space=vmem, size = 0x12000, scoped, tag = 'internal scratch']
  %s0 = inlined_call_operand.vmem [shape: f32[256,32], index: 0, kind: input, shape index: {}]
  %s1 = inlined_call_operand.vmem [shape: bf16[32,64], index: 1, kind: input, shape index: {}]
  %s2 = inlined_call_operand.vmem [shape: bf16[64,64], index: 2, kind: input, shape index: {}]
  %s3 = inlined_call_operand.vmem [shape: bf16[16,64], index: 3, kind: input, shape index: {}]
  %s4 = inlined_call_operand.hbm [shape: f32[16,256], index: 4, kind: output, shape index: {}]
  %s5 = sld [smem:[#allocation0]]
  $region49: #{tpu_custom_call.1} parent=0
    _
  %s7 = ssub.s32 1, %s5
  %s8 = scalar_select 0, %s7, %s5
  $region1: #{tpu_custom_call.1} parent=0
    #allocation2 [shape = 'u8[16384]{0}', space=vmem, size = 0x4000, scoped, tag = 'output window, operand 0']
    #allocation3 [shape = 's32[2]{0}', space=sflag, size = 0x8, scoped, tag = 'scoped memory for tpu_custom_call.1']
    %9 = vsyncpa [#allocation3], 0
    %s10 = scalar_lea.sflag [#allocation3], 1
    %11 = vsyncpa %s10, 0
    loop: start=0, step=1, limit=4
    $region2: #{tpu_custom_call.1} parent=1 // loop_pre_header
      _
    $region3: #{tpu_custom_call.1} parent=1 // loop_header
      %s13 = sphi 0, %s17
      %p14 = scmp.ge.s32.totalorder %s13, 4
      %s23 = sphi 0, %s25
      %s26 = sphi 0, %s23
      %s27 = sphi 0, %s26
      %s43 = sphi 0, %s27
      %s47 = sphi 0, %s47
      %s49 = sphi 0, %s47
      %s50 = sphi 0, %s49
      %s64 = sphi 0, %s50
      %s68 = sphi 0, %s68
      %s70 = sphi 0, %s68
      %s71 = sphi 0, %s70
      %s85 = sphi 0, %s71
      %s89 = sphi 0, %s89
      %s91 = sphi 0, %s89
      %s92 = sphi 0, %s91
      %s106 = sphi 0, %s92
      %s112 = sphi 0, %s114
      %s115 = sphi 0, %s112
      %s116 = sphi 0, %s115
      %s132 = sphi 0, %s116
    $region4: #{tpu_custom_call.1} parent=1 // loop_header_branch
      %16 = sbr.rel (%p14) target = $region8
    $region5: #{tpu_custom_call.1} parent=1 // loop_body
      %s18 = ssub.s32 %s13, 1
      %s19 = ssub.s32 %s13, 2
      %s20 = sadd.s32 %s13, 1
      %s21 = ssub.s32 %s13, %s20
      %p22 = scmp.eq.s32.totalorder %s21, 0
      %s24 = sadd.s32 %s23, 1
      %s25 = scalar_select %p22, %s23, %s24
      %p28 = pneg %p22
      %p29 = scmp.eq.s32.totalorder %s13, 1
      %p30 = por %p28, %p29
      %p31 = scmp.ne.s32.totalorder %s23, %s26
      %p32 = scmp.eq.s32.totalorder %s13, 0
      %p33 = por %p31, %p32
      %p34 = scmp.ne.s32.totalorder %s23, %s26
      %p35 = scmp.eq.s32.totalorder %s18, 1
      %p36 = por %p34, %p35
      %p37 = scmp.ne.s32.totalorder %s26, %s27
      %p38 = scmp.eq.s32.totalorder %s18, 0
      %p39 = por %p37, %p38
      %p40 = scmp.ne.s32.totalorder %s26, %s27
      %p41 = scmp.eq.s32.totalorder %s19, 1
      %p42 = por %p40, %p41
      %p44 = scmp.ne.s32.totalorder %s27, %s43
      %p45 = scmp.eq.s32.totalorder %s19, 0
      %p46 = por %p44, %p45
      %s48 = sadd.s32 %s47, 1
      %p51 = scmp.eq.s32.totalorder %s13, 1
      %p52 = scmp.ne.s32.totalorder %s47, %s49
      %p53 = scmp.eq.s32.totalorder %s13, 0
      %p54 = por %p52, %p53
      %p55 = scmp.ne.s32.totalorder %s47, %s49
      %p56 = scmp.eq.s32.totalorder %s18, 1
      %p57 = por %p55, %p56
      %p58 = scmp.ne.s32.totalorder %s49, %s50
      %p59 = scmp.eq.s32.totalorder %s18, 0
      %p60 = por %p58, %p59
      %p61 = scmp.ne.s32.totalorder %s49, %s50
      %p62 = scmp.eq.s32.totalorder %s19, 1
      %p63 = por %p61, %p62
      %p65 = scmp.ne.s32.totalorder %s50, %s64
      %p66 = scmp.eq.s32.totalorder %s19, 0
      %p67 = por %p65, %p66
      %s69 = sadd.s32 %s68, 1
      %p72 = scmp.eq.s32.totalorder %s13, 1
      %p73 = scmp.ne.s32.totalorder %s68, %s70
      %p74 = scmp.eq.s32.totalorder %s13, 0
      %p75 = por %p73, %p74
      %p76 = scmp.ne.s32.totalorder %s68, %s70
      %p77 = scmp.eq.s32.totalorder %s18, 1
      %p78 = por %p76, %p77
      %p79 = scmp.ne.s32.totalorder %s70, %s71
      %p80 = scmp.eq.s32.totalorder %s18, 0
      %p81 = por %p79, %p80
      %p82 = scmp.ne.s32.totalorder %s70, %s71
      %p83 = scmp.eq.s32.totalorder %s19, 1
      %p84 = por %p82, %p83
      %p86 = scmp.ne.s32.totalorder %s71, %s85
      %p87 = scmp.eq.s32.totalorder %s19, 0
      %p88 = por %p86, %p87
      %s90 = sadd.s32 %s89, 1
      %p93 = scmp.eq.s32.totalorder %s13, 1
      %p94 = scmp.ne.s32.totalorder %s89, %s91
      %p95 = scmp.eq.s32.totalorder %s13, 0
      %p96 = por %p94, %p95
      %p97 = scmp.ne.s32.totalorder %s89, %s91
      %p98 = scmp.eq.s32.totalorder %s18, 1
      %p99 = por %p97, %p98
      %p100 = scmp.ne.s32.totalorder %s91, %s92
      %p101 = scmp.eq.s32.totalorder %s18, 0
      %p102 = por %p100, %p101
      %p103 = scmp.ne.s32.totalorder %s91, %s92
      %p104 = scmp.eq.s32.totalorder %s19, 1
      %p105 = por %p103, %p104
      %p107 = scmp.ne.s32.totalorder %s92, %s106
      %p108 = scmp.eq.s32.totalorder %s19, 0
      %p109 = por %p107, %p108
      %s110 = ssub.s32 %s13, %s20
      %p111 = scmp.eq.s32.totalorder %s110, 0
      %s113 = sadd.s32 %s112, 1
      %s114 = scalar_select %p111, %s112, %s113
      %p117 = pneg %p111
      %p118 = scmp.eq.s32.totalorder %s13, 1
      %p119 = por %p117, %p118
      %p120 = scmp.ne.s32.totalorder %s112, %s115
      %p121 = scmp.eq.s32.totalorder %s13, 0
      %p122 = por %p120, %p121
      %p123 = scmp.ne.s32.totalorder %s112, %s115
      %p124 = scmp.eq.s32.totalorder %s18, 1
      %p125 = por %p123, %p124
      %p126 = scmp.ne.s32.totalorder %s115, %s116
      %p127 = scmp.eq.s32.totalorder %s18, 0
      %p128 = por %p126, %p127
      %p129 = scmp.ne.s32.totalorder %s115, %s116
      %p130 = scmp.eq.s32.totalorder %s19, 1
      %p131 = por %p129, %p130
      %p133 = scmp.ne.s32.totalorder %s116, %s132
      %p134 = scmp.eq.s32.totalorder %s19, 0
      %p135 = por %p133, %p134
      %p136 = scmp.le.s32.totalorder 1, %s13
      %p137 = scmp.lt.s32.totalorder %s13, 3
      %p138 = pnand %p136, %p137
      %p139 = pneg %p138
      // Predicated region
      $region9: #{tpu_custom_call.1} parent=5 // pred_check
        _
      $region10: #{tpu_custom_call.1} parent=5 // pred_check_branch
        %141 = sbr.rel (%p138) target = $region12
      $region11: #{tpu_custom_call.1} parent=5 // pred_region
        %s142 = ssub.s32 %s13, 1
        // Predicated region
        $region13: #{tpu_custom_call.1} parent=11 // pred_check
          %p143 = pneg %p60
        $region14: #{tpu_custom_call.1} parent=11 // pred_check_branch
          %145 = sbr.rel (%p143) target = $region16
        $region15: #{tpu_custom_call.1} parent=11 // pred_region
          _
        $region16: #{tpu_custom_call.1} parent=11 // pred_fallthru
          _
        // Predicated region
        $region17: #{tpu_custom_call.1} parent=11 // pred_check
          %p146 = pneg %p81
        $region18: #{tpu_custom_call.1} parent=11 // pred_check_branch
          %148 = sbr.rel (%p146) target = $region20
        $region19: #{tpu_custom_call.1} parent=11 // pred_region
          _
        $region20: #{tpu_custom_call.1} parent=11 // pred_fallthru
          _
        // Predicated region
        $region21: #{tpu_custom_call.1} parent=11 // pred_check
          %p149 = pneg %p102
        $region22: #{tpu_custom_call.1} parent=11 // pred_check_branch
          %151 = sbr.rel (%p149) target = $region24
        $region23: #{tpu_custom_call.1} parent=11 // pred_region
          _
        $region24: #{tpu_custom_call.1} parent=11 // pred_fallthru
          _
      $region12: #{tpu_custom_call.1} parent=5 // pred_fallthru
        _
      %p152 = scmp.lt.s32.totalorder %s13, 2
      // Predicated region
      $region25: #{tpu_custom_call.1} parent=5 // pred_check
        %p153 = pneg %p152
      $region26: #{tpu_custom_call.1} parent=5 // pred_check_branch
        %155 = sbr.rel (%p153) target = $region28
      $region27: #{tpu_custom_call.1} parent=5 // pred_region
        // Predicated region
        $region29: #{tpu_custom_call.1} parent=27 // pred_check
          %p156 = pneg %p33
        $region30: #{tpu_custom_call.1} parent=27 // pred_check_branch
          %158 = sbr.rel (%p156) target = $region32
        $region31: #{tpu_custom_call.1} parent=27 // pred_region
          %s159 = smul.u32 16, %s13
          %p160 = scmp.lt.s32.totalorder %s159, 31
          %s161 = scalar_select %p160, %s159, 31
          %s162 = smul.addr %s161, 8
          %s163 = scalar_lea.vmem %s0, %s162
          %s164 = smul.u32 16, %s13
        $region32: #{tpu_custom_call.1} parent=27 // pred_fallthru
          _
      $region28: #{tpu_custom_call.1} parent=5 // pred_fallthru
        _
      %p165 = scmp.le.s32.totalorder 1, %s13
      %p166 = scmp.lt.s32.totalorder %s13, 3
      %p167 = pnand %p165, %p166
      %p168 = pneg %p167
      // Predicated region
      $region33: #{tpu_custom_call.1} parent=5 // pred_check
        _
      $region34: #{tpu_custom_call.1} parent=5 // pred_check_branch
        %170 = sbr.rel (%p167) target = $region36
      $region35: #{tpu_custom_call.1} parent=5 // pred_region
        %s171 = ssub.s32 %s13, 1
        %s172 = smul.u32 16, %s18
        %p173 = scmp.lt.s32.totalorder %s172, 31
        %s174 = scalar_select %p173, %s172, 31
        %s175 = smul.addr %s174, 8
        %s176 = scalar_lea.vmem %s0, %s175
        %p177 = pneg %p39
        %p178 = pneg %p36
        %p179 = pneg %p60
        %p180 = pneg %p57
        %p181 = pneg %p81
        %p182 = pneg %p78
        %p183 = pneg %p102
        %p184 = pneg %p99
        %p185 = pneg %p128
        %p186 = pneg %p125
        %s187 = sand.u32 %s115, 1
        %s188 = scalar_lea.sflag [#allocation3], %s187
        %s189 = sand.u32 %s115, 1
        %s190 = smul.addr %s189, 16
        %s191 = scalar_lea.vmem [#allocation2], %s190
        %s192 = smul.u32 16, %s18
        %p193 = scmp.lt.s32.totalorder %s192, 31
        %s194 = scalar_select %p193, %s192, 31
        %s195 = smul.addr %s194, 8
        %s196 = scalar_lea.vmem %s0, %s195
        %s197 = smul.u32 16, %s18
        %v199 = vld [vmem:[%s196] sm:$0xff]
        %v200 = vld [vmem:[%s196 + $0x8] sm:$0xff]
        %v201 = vld [vmem:[%s196 + $0x10] sm:$0xff]
        %v202 = vld [vmem:[%s196 + $0x18] sm:$0xff]
        %v203 = vld [vmem:[%s196 + $0x20] sm:$0xff]
        %v204 = vld [vmem:[%s196 + $0x28] sm:$0xff]
        %v205 = vld [vmem:[%s196 + $0x30] sm:$0xff]
        %v206 = vld [vmem:[%s196 + $0x38] sm:$0xff]
        %v207 = vld [vmem:[%s196 + $0x40] sm:$0xff]
        %v208 = vld [vmem:[%s196 + $0x48] sm:$0xff]
        %v209 = vld [vmem:[%s196 + $0x50] sm:$0xff]
        %v210 = vld [vmem:[%s196 + $0x58] sm:$0xff]
        %v211 = vld [vmem:[%s196 + $0x60] sm:$0xff]
        %v212 = vld [vmem:[%s196 + $0x68] sm:$0xff]
        %v213 = vld [vmem:[%s196 + $0x70] sm:$0xff]
        %v214 = vld [vmem:[%s196 + $0x78] sm:$0xff]
        %v215 = vpack.c.bf16 %v200, %v199
        %v216 = vpack.c.bf16 %v202, %v201
        %v217 = vpack.c.bf16 %v204, %v203
        %v218 = vpack.c.bf16 %v206, %v205
        %v219 = vpack.c.bf16 %v208, %v207
        %v220 = vpack.c.bf16 %v210, %v209
        %v221 = vpack.c.bf16 %v212, %v211
        %v222 = vpack.c.bf16 %v214, %v213
        %v223 = vld [vmem:[%s1] sm:$0xf]
        %v224 = vld [vmem:[%s1 + $0x4] sm:$0xf]
        %v225 = vld [vmem:[%s1 + $0x8] sm:$0xf]
        %v226 = vld [vmem:[%s1 + $0xc] sm:$0xf]
        %v231 = vunpack.c.l.b16 %v223
        %v232 = vunpack.c.l.b16 %v224
        %v233 = vunpack.c.l.b16 %v225
        %v234 = vunpack.c.l.b16 %v226
        %v235 = vpack.c.b16 %v232, %v231
        %v236 = vpack.c.b16 %v234, %v233
        %vm239 = vcmask 261120
        %v241 = vsel %vm239, %v215, 0
        %v244 = vsel %vm239, %v216, 0
        %v247 = vsel %vm239, %v217, 0
        %v250 = vsel %vm239, %v218, 0
        %v253 = vsel %vm239, %v219, 0
        %v256 = vsel %vm239, %v220, 0
        %v259 = vsel %vm239, %v221, 0
        %v262 = vsel %vm239, %v222, 0
        %264 = vmatprep.subr.bf16.mxu0 0
        %265 = vmatpush1.bf16.msra.mxu0 0
        %266 = vmatprep.subr.bf16.mxu0 0
        %267 = vmatpush1.bf16.msra.mxu0 0
        %268 = vmatprep.subr.bf16.mxu0 0
        %269 = vmatpush1.bf16.msra.mxu0 0
        %270 = vmatprep.subr.bf16.mxu0 0
        %271 = vmatpush1.bf16.msra.mxu0 0
        %272 = vmatprep.subr.bf16.mxu0 0
        %273 = vmatpush1.bf16.msra.mxu0 0
        %274 = vmatprep.subr.bf16.mxu0 0
        %275 = vmatpush1.bf16.msra.mxu0 0
        %276 = vmatprep.subr.bf16.mxu0 0
        %277 = vmatpush1.bf16.msra.mxu0 %v236
        %278 = vmatprep.subr.bf16.mxu0 0
        %279 = vmatpush1.bf16.msra.mxu0 %v235
        %280 = vmatprep.subr.bf16.mxu0 0
        %281 = vmatpush2.bf16.msra.mxu0 0
        %282 = vmatprep.subr.bf16.mxu0 0
        %283 = vmatpush2.bf16.msra.mxu0 0
        %284 = vmatprep.subr.bf16.mxu0 0
        %285 = vmatpush2.bf16.msra.mxu0 0
        %286 = vmatprep.subr.bf16.mxu0 0
        %287 = vmatpush2.bf16.msra.mxu0 0
        %288 = vmatprep.subr.bf16.mxu0 0
        %289 = vmatpush2.bf16.msra.mxu0 0
        %290 = vmatprep.subr.bf16.mxu0 0
        %291 = vmatpush2.bf16.msra.mxu0 0
        %292 = vmatprep.subr.bf16.mxu0 0
        %293 = vmatpush2.bf16.msra.mxu0 0
        %294 = vmatprep.subr.bf16.mxu0 0
        %295 = vmatpush2.bf16.msra.mxu0 0
        %296 = vmatprep.mubr.bf16.mxu0 0
        %297 = vmatmul.mubr.bf16.gmra.mxu0 %v241
        %v298 = vpop.f32.mrf.mxu0
        %v299 = vadd.f32 0.0, %v298
        %v300 = vpop.f32.mrf.mxu0
        %v301 = vpop.f32.mrf.mxu0
        %v302 = vadd.f32 0.0, %v301
        %v303 = vpop.f32.mrf.mxu0
        %304 = vmatprep.mubr.bf16.mxu0 0
        %305 = vmatmul.mubr.bf16.gmra.mxu0 %v244
        %v306 = vpop.f32.mrf.mxu0
        %v307 = vadd.f32 0.0, %v306
        %v308 = vpop.f32.mrf.mxu0
        %v309 = vpop.f32.mrf.mxu0
        %v310 = vadd.f32 0.0, %v309
        %v311 = vpop.f32.mrf.mxu0
        %312 = vmatprep.mubr.bf16.mxu0 0
        %313 = vmatmul.mubr.bf16.gmra.mxu0 %v247
        %v314 = vpop.f32.mrf.mxu0
        %v315 = vadd.f32 0.0, %v314
        %v316 = vpop.f32.mrf.mxu0
        %v317 = vpop.f32.mrf.mxu0
        %v318 = vadd.f32 0.0, %v317
        %v319 = vpop.f32.mrf.mxu0
        %320 = vmatprep.mubr.bf16.mxu0 0
        %321 = vmatmul.mubr.bf16.gmra.mxu0 %v250
        %v322 = vpop.f32.mrf.mxu0
        %v323 = vadd.f32 0.0, %v322
        %v324 = vpop.f32.mrf.mxu0
        %v325 = vpop.f32.mrf.mxu0
        %v326 = vadd.f32 0.0, %v325
        %v327 = vpop.f32.mrf.mxu0
        %328 = vmatprep.mubr.bf16.mxu0 0
        %329 = vmatmul.mubr.bf16.gmra.mxu0 %v253
        %v330 = vpop.f32.mrf.mxu0
        %v331 = vadd.f32 0.0, %v330
        %v332 = vpop.f32.mrf.mxu0
        %v333 = vpop.f32.mrf.mxu0
        %v334 = vadd.f32 0.0, %v333
        %v335 = vpop.f32.mrf.mxu0
        %336 = vmatprep.mubr.bf16.mxu0 0
        %337 = vmatmul.mubr.bf16.gmra.mxu0 %v256
        %v338 = vpop.f32.mrf.mxu0
        %v339 = vadd.f32 0.0, %v338
        %v340 = vpop.f32.mrf.mxu0
        %v341 = vpop.f32.mrf.mxu0
        %v342 = vadd.f32 0.0, %v341
        %v343 = vpop.f32.mrf.mxu0
        %344 = vmatprep.mubr.bf16.mxu0 0
        %345 = vmatmul.mubr.bf16.gmra.mxu0 %v259
        %v346 = vpop.f32.mrf.mxu0
        %v347 = vadd.f32 0.0, %v346
        %v348 = vpop.f32.mrf.mxu0
        %v349 = vpop.f32.mrf.mxu0
        %v350 = vadd.f32 0.0, %v349
        %v351 = vpop.f32.mrf.mxu0
        %352 = vmatprep.mubr.bf16.mxu0 0
        %353 = vmatmul.mubr.bf16.gmra.mxu0 %v262
        %v354 = vpop.f32.mrf.mxu0
        %v355 = vadd.f32 0.0, %v354
        %v356 = vpop.f32.mrf.mxu0
        %v357 = vpop.f32.mrf.mxu0
        %v358 = vadd.f32 0.0, %v357
        %v359 = vpop.f32.mrf.mxu0
        %360 = vdwg.mxu0
        %v361 = vmax.f32 %v299, 0.0
        %v362 = vmax.f32 %v302, 0.0
        %v363 = vmax.f32 %v307, 0.0
        %v364 = vmax.f32 %v310, 0.0
        %v365 = vmax.f32 %v315, 0.0
        %v366 = vmax.f32 %v318, 0.0
        %v367 = vmax.f32 %v323, 0.0
        %v368 = vmax.f32 %v326, 0.0
        %v369 = vmax.f32 %v331, 0.0
        %v370 = vmax.f32 %v334, 0.0
        %v371 = vmax.f32 %v339, 0.0
        %v372 = vmax.f32 %v342, 0.0
        %v373 = vmax.f32 %v347, 0.0
        %v374 = vmax.f32 %v350, 0.0
        %v375 = vmax.f32 %v355, 0.0
        %v376 = vmax.f32 %v358, 0.0
        %v377 = vpack.c.bf16 %v362, %v361
        %v378 = vpack.c.bf16 %v364, %v363
        %v379 = vpack.c.bf16 %v366, %v365
        %v380 = vpack.c.bf16 %v368, %v367
        %v381 = vpack.c.bf16 %v370, %v369
        %v382 = vpack.c.bf16 %v372, %v371
        %v383 = vpack.c.bf16 %v374, %v373
        %v384 = vpack.c.bf16 %v376, %v375
        %v385 = vld [vmem:[%s2] sm:$0xf]
        %v386 = vld [vmem:[%s2 + $0x4] sm:$0xf]
        %v387 = vld [vmem:[%s2 + $0x8] sm:$0xf]
        %v388 = vld [vmem:[%s2 + $0xc] sm:$0xf]
        %v389 = vld [vmem:[%s2 + $0x10] sm:$0xf]
        %v390 = vld [vmem:[%s2 + $0x14] sm:$0xf]
        %v391 = vld [vmem:[%s2 + $0x18] sm:$0xf]
        %v392 = vld [vmem:[%s2 + $0x1c] sm:$0xf]
        %v401 = vunpack.c.l.b16 %v385
        %v402 = vunpack.c.l.b16 %v386
        %v403 = vunpack.c.l.b16 %v387
        %v404 = vunpack.c.l.b16 %v388
        %v405 = vunpack.c.l.b16 %v389
        %v406 = vunpack.c.l.b16 %v390
        %v407 = vunpack.c.l.b16 %v391
        %v408 = vunpack.c.l.b16 %v392
        %v409 = vpack.c.b16 %v402, %v401
        %v410 = vpack.c.b16 %v404, %v403
        %v411 = vpack.c.b16 %v406, %v405
        %v412 = vpack.c.b16 %v408, %v407
        %vm417 = vcmask 523264
        %v419 = vsel %vm417, %v377, 0
        %v422 = vsel %vm417, %v378, 0
        %v425 = vsel %vm417, %v379, 0
        %v428 = vsel %vm417, %v380, 0
        %v431 = vsel %vm417, %v381, 0
        %v434 = vsel %vm417, %v382, 0
        %v437 = vsel %vm417, %v383, 0
        %v440 = vsel %vm417, %v384, 0
        %442 = vmatprep.subr.bf16.mxu0 0
        %443 = vmatpush1.bf16.msra.mxu0 0
        %444 = vmatprep.subr.bf16.mxu0 0
        %445 = vmatpush1.bf16.msra.mxu0 0
        %446 = vmatprep.subr.bf16.mxu0 0
        %447 = vmatpush1.bf16.msra.mxu0 0
        %448 = vmatprep.subr.bf16.mxu0 0
        %449 = vmatpush1.bf16.msra.mxu0 0
        %450 = vmatprep.subr.bf16.mxu0 0
        %451 = vmatpush1.bf16.msra.mxu0 %v412
        %452 = vmatprep.subr.bf16.mxu0 0
        %453 = vmatpush1.bf16.msra.mxu0 %v411
        %454 = vmatprep.subr.bf16.mxu0 0
        %455 = vmatpush1.bf16.msra.mxu0 %v410
        %456 = vmatprep.subr.bf16.mxu0 0
        %457 = vmatpush1.bf16.msra.mxu0 %v409
        %458 = vmatprep.subr.bf16.mxu0 0
        %459 = vmatpush2.bf16.msra.mxu0 0
        %460 = vmatprep.subr.bf16.mxu0 0
        %461 = vmatpush2.bf16.msra.mxu0 0
        %462 = vmatprep.subr.bf16.mxu0 0
        %463 = vmatpush2.bf16.msra.mxu0 0
        %464 = vmatprep.subr.bf16.mxu0 0
        %465 = vmatpush2.bf16.msra.mxu0 0
        %466 = vmatprep.subr.bf16.mxu0 0
        %467 = vmatpush2.bf16.msra.mxu0 0
        %468 = vmatprep.subr.bf16.mxu0 0
        %469 = vmatpush2.bf16.msra.mxu0 0
        %470 = vmatprep.subr.bf16.mxu0 0
        %471 = vmatpush2.bf16.msra.mxu0 0
        %472 = vmatprep.subr.bf16.mxu0 0
        %473 = vmatpush2.bf16.msra.mxu0 0
        %474 = vmatprep.mubr.bf16.mxu0 0
        %475 = vmatmul.mubr.bf16.gmra.mxu0 %v419
        %v476 = vpop.f32.mrf.mxu0
        %v477 = vadd.f32 0.0, %v476
        %v478 = vpop.f32.mrf.mxu0
        %v479 = vpop.f32.mrf.mxu0
        %v480 = vadd.f32 0.0, %v479
        %v481 = vpop.f32.mrf.mxu0
        %482 = vmatprep.mubr.bf16.mxu0 0
        %483 = vmatmul.mubr.bf16.gmra.mxu0 %v422
        %v484 = vpop.f32.mrf.mxu0
        %v485 = vadd.f32 0.0, %v484
        %v486 = vpop.f32.mrf.mxu0
        %v487 = vpop.f32.mrf.mxu0
        %v488 = vadd.f32 0.0, %v487
        %v489 = vpop.f32.mrf.mxu0
        %490 = vmatprep.mubr.bf16.mxu0 0
        %491 = vmatmul.mubr.bf16.gmra.mxu0 %v425
        %v492 = vpop.f32.mrf.mxu0
        %v493 = vadd.f32 0.0, %v492
        %v494 = vpop.f32.mrf.mxu0
        %v495 = vpop.f32.mrf.mxu0
        %v496 = vadd.f32 0.0, %v495
        %v497 = vpop.f32.mrf.mxu0
        %498 = vmatprep.mubr.bf16.mxu0 0
        %499 = vmatmul.mubr.bf16.gmra.mxu0 %v428
        %v500 = vpop.f32.mrf.mxu0
        %v501 = vadd.f32 0.0, %v500
        %v502 = vpop.f32.mrf.mxu0
        %v503 = vpop.f32.mrf.mxu0
        %v504 = vadd.f32 0.0, %v503
        %v505 = vpop.f32.mrf.mxu0
        %506 = vmatprep.mubr.bf16.mxu0 0
        %507 = vmatmul.mubr.bf16.gmra.mxu0 %v431
        %v508 = vpop.f32.mrf.mxu0
        %v509 = vadd.f32 0.0, %v508
        %v510 = vpop.f32.mrf.mxu0
        %v511 = vpop.f32.mrf.mxu0
        %v512 = vadd.f32 0.0, %v511
        %v513 = vpop.f32.mrf.mxu0
        %514 = vmatprep.mubr.bf16.mxu0 0
        %515 = vmatmul.mubr.bf16.gmra.mxu0 %v434
        %v516 = vpop.f32.mrf.mxu0
        %v517 = vadd.f32 0.0, %v516
        %v518 = vpop.f32.mrf.mxu0
        %v519 = vpop.f32.mrf.mxu0
        %v520 = vadd.f32 0.0, %v519
        %v521 = vpop.f32.mrf.mxu0
        %522 = vmatprep.mubr.bf16.mxu0 0
        %523 = vmatmul.mubr.bf16.gmra.mxu0 %v437
        %v524 = vpop.f32.mrf.mxu0
        %v525 = vadd.f32 0.0, %v524
        %v526 = vpop.f32.mrf.mxu0
        %v527 = vpop.f32.mrf.mxu0
        %v528 = vadd.f32 0.0, %v527
        %v529 = vpop.f32.mrf.mxu0
        %530 = vmatprep.mubr.bf16.mxu0 0
        %531 = vmatmul.mubr.bf16.gmra.mxu0 %v440
        %v532 = vpop.f32.mrf.mxu0
        %v533 = vadd.f32 0.0, %v532
        %v534 = vpop.f32.mrf.mxu0
        %v535 = vpop.f32.mrf.mxu0
        %v536 = vadd.f32 0.0, %v535
        %v537 = vpop.f32.mrf.mxu0
        %538 = vdwg.mxu0
        %v539 = vmax.f32 %v477, 0.0
        %v540 = vmax.f32 %v480, 0.0
        %v541 = vmax.f32 %v485, 0.0
        %v542 = vmax.f32 %v488, 0.0
        %v543 = vmax.f32 %v493, 0.0
        %v544 = vmax.f32 %v496, 0.0
        %v545 = vmax.f32 %v501, 0.0
        %v546 = vmax.f32 %v504, 0.0
        %v547 = vmax.f32 %v509, 0.0
        %v548 = vmax.f32 %v512, 0.0
        %v549 = vmax.f32 %v517, 0.0
        %v550 = vmax.f32 %v520, 0.0
        %v551 = vmax.f32 %v525, 0.0
        %v552 = vmax.f32 %v528, 0.0
        %v553 = vmax.f32 %v533, 0.0
        %v554 = vmax.f32 %v536, 0.0
        %v555 = vpack.c.bf16 %v540, %v539
        %v556 = vpack.c.bf16 %v542, %v541
        %v557 = vpack.c.bf16 %v544, %v543
        %v558 = vpack.c.bf16 %v546, %v545
        %v559 = vpack.c.bf16 %v548, %v547
        %v560 = vpack.c.bf16 %v550, %v549
        %v561 = vpack.c.bf16 %v552, %v551
        %v562 = vpack.c.bf16 %v554, %v553
        %v563 = vld [vmem:[%s3] sm:$0xf]
        %v564 = vld [vmem:[%s3 + $0x4] sm:$0xf]
        %v567 = vunpack.c.l.b16 %v563
        %v568 = vunpack.c.l.b16 %v564
        %v569 = vpack.c.b16 %v568, %v567
        %v571 = vsel %vm417, %v569, 0
        %v574 = vsel %vm417, %v555, 0
        %v577 = vsel %vm417, %v556, 0
        %v580 = vsel %vm417, %v557, 0
        %v583 = vsel %vm417, %v558, 0
        %v586 = vsel %vm417, %v559, 0
        %v589 = vsel %vm417, %v560, 0
        %v592 = vsel %vm417, %v561, 0
        %v595 = vsel %vm417, %v562, 0
        %597 = vmatprep.subr.bf16.mxu0 0
        %598 = vmatpush1.bf16.xpose.msra.mxu0 %v595
        %599 = vmatprep.subr.bf16.mxu0 0
        %600 = vmatpush1.bf16.xpose.msra.mxu0 %v592
        %601 = vmatprep.subr.bf16.mxu0 0
        %602 = vmatpush1.bf16.xpose.msra.mxu0 %v589
        %603 = vmatprep.subr.bf16.mxu0 0
        %604 = vmatpush1.bf16.xpose.msra.mxu0 %v586
        %605 = vmatprep.subr.bf16.mxu0 0
        %606 = vmatpush1.bf16.xpose.msra.mxu0 %v583
        %607 = vmatprep.subr.bf16.mxu0 0
        %608 = vmatpush1.bf16.xpose.msra.mxu0 %v580
        %609 = vmatprep.subr.bf16.mxu0 0
        %610 = vmatpush1.bf16.xpose.msra.mxu0 %v577
        %611 = vmatprep.subr.bf16.mxu0 0
        %612 = vmatpush1.bf16.xpose.msra.mxu0 %v574
        %613 = vmatprep.subr.bf16.mxu0 0
        %614 = vmatpush2.bf16.xpose.msra.mxu0 0
        %615 = vmatprep.subr.bf16.mxu0 0
        %616 = vmatpush2.bf16.xpose.msra.mxu0 0
        %617 = vmatprep.subr.bf16.mxu0 0
        %618 = vmatpush2.bf16.xpose.msra.mxu0 0
        %619 = vmatprep.subr.bf16.mxu0 0
        %620 = vmatpush2.bf16.xpose.msra.mxu0 0
        %621 = vmatprep.subr.bf16.mxu0 0
        %622 = vmatpush2.bf16.xpose.msra.mxu0 0
        %623 = vmatprep.subr.bf16.mxu0 0
        %624 = vmatpush2.bf16.xpose.msra.mxu0 0
        %625 = vmatprep.subr.bf16.mxu0 0
        %626 = vmatpush2.bf16.xpose.msra.mxu0 0
        %627 = vmatprep.subr.bf16.mxu0 0
        %628 = vmatpush2.bf16.xpose.msra.mxu0 0
        %629 = vmatprep.mubr.bf16.mxu0 0
        %630 = vmatmul.mubr.bf16.gmra.mxu0 %v571
        %v631 = vpop.f32.mrf.mxu0
        %v632 = vadd.f32 0.0, %v631
        %v633 = vpop.f32.mrf.mxu0
        %v634 = vpop.f32.mrf.mxu0
        %v635 = vadd.f32 0.0, %v634
        %v636 = vpop.f32.mrf.mxu0
        %637 = vdwg.mxu0
        %638 = vst [vmem:[%s191] sm:$0xff] %v632
        %639 = vst [vmem:[%s191 + $0x8] sm:$0xff] %v635
        %s640 = sand.u32 %s115, 1
        %s641 = scalar_lea.sflag [#allocation3], %s640
        %s642 = sand.u32 %s115, 1
        %s643 = smul.addr %s642, 16
        %s644 = scalar_lea.vmem [#allocation2], %s643
        // Predicated region
        $region37: #{tpu_custom_call.1} parent=35 // pred_check
          %p645 = pneg %p125
        $region38: #{tpu_custom_call.1} parent=35 // pred_check_branch
          %647 = sbr.rel (%p645) target = $region40
        $region39: #{tpu_custom_call.1} parent=35 // pred_region
          %s649 = ssub.s32 256, 256
          %650 = vsyncadd %s641, %s649
          %s651 = smul.addr %s18, 128
          %s652 = scalar_lea.hbm %s4, %s651
          %s653 = sshll.u32 %s644, 4
          %s654 = int_to_ptr.vmem [resolvable:$true] %s653
          %659 = dma.vmem_to_hbm [thread:$0]  %s654, 256, %s652, %s641, 128, 256, 8
        $region40: #{tpu_custom_call.1} parent=35 // pred_fallthru
          _
      $region36: #{tpu_custom_call.1} parent=5 // pred_fallthru
        _
      %p660 = scmp.le.s32.totalorder 2, %s13
      // Predicated region
      $region41: #{tpu_custom_call.1} parent=5 // pred_check
        %p661 = pneg %p660
      $region42: #{tpu_custom_call.1} parent=5 // pred_check_branch
        %663 = sbr.rel (%p661) target = $region44
      $region43: #{tpu_custom_call.1} parent=5 // pred_region
        %s664 = ssub.s32 %s13, 2
        // Predicated region
        $region45: #{tpu_custom_call.1} parent=43 // pred_check
          %p665 = pneg %p131
        $region46: #{tpu_custom_call.1} parent=43 // pred_check_branch
          %667 = sbr.rel (%p665) target = $region48
        $region47: #{tpu_custom_call.1} parent=43 // pred_region
          %s668 = sand.u32 %s116, 1
          %s669 = scalar_lea.sflag [#allocation3], %s668
          %s670 = sand.u32 %s116, 1
          %s671 = smul.addr %s670, 16
          %s672 = scalar_lea.vmem [#allocation2], %s671
          %673 = dma.done %s669, 256
        $region48: #{tpu_custom_call.1} parent=43 // pred_fallthru
          _
      $region44: #{tpu_custom_call.1} parent=5 // pred_fallthru
        _
    $region6: #{tpu_custom_call.1} parent=1 // loop_footer
      %s17 = sadd.s32 1, %s13
    $region7: #{tpu_custom_call.1} parent=1 // loop_footer_branch
      %12 = sbr.rel target = $region3
    $region8: #{tpu_custom_call.1} parent=1 // loop_exit
      _
    %674 = vsyncpa [#allocation3], 1
    %s675 = scalar_lea.sflag [#allocation3], 1
    %676 = vsyncpa %s675, 1

</llo_original>
